<compile_context>
chip_gen: v6e
topology: v6e:2x2x1
jax: 0.10.0
libtpu: 0.0.40
codegen_flags: <defaults>
</compile_context>

<pallas_src>
import jax
import jax.numpy as jnp
from jax.experimental import pallas as pl
from jax.experimental.pallas import tpu as pltpu

FEATS = (30, 128, 256, 64, 1)
LANE = 128  # TPU lane width; batch tiles are multiples of this.


def _round_up(x, m):
    return (x + m - 1) // m * m


def _fused_linear_kernel(x1_ref, x2_ref, x3_ref,
                         w1_ref, w2_ref, w3_ref,
                         b_ref, o_ref):
    """out[r] = <x1[r],w1> + <x2[r],w2> + <x3[r],w3> + b  for a TB-row tile.

    VPU broadcast-multiply + lane reduction in f32; no MXU.  The (TB,)
    result is written lane-dense as a (1, 1, TB) slab (unmasked stores).
    """
    acc = jnp.sum(x1_ref[...].astype(jnp.float32) * w1_ref[...], axis=-1)  # (TB,)
    acc = acc + jnp.sum(x2_ref[...].astype(jnp.float32) * w2_ref[...], axis=-1)
    acc = acc + jnp.sum(x3_ref[...].astype(jnp.float32) * w3_ref[...], axis=-1)
    acc = acc + b_ref[0, 0]                                  # SMEM scalar bias
    o_ref[...] = acc[None, None, :].astype(o_ref.dtype)      # (1, 1, TB)


def _fuse_params(params):
    """Collapse the activation-free EqualLinear chain into one affine map.

    Exact (no nonlinearities); composed in f32 at HIGHEST precision so the
    fused result matches the layered reference to ~1e-6.  Do this once at
    parameter-load time in a real model.
    """
    w, b = params[0]
    for w_i, b_i in params[1:]:
        w = jnp.dot(w, w_i, precision=jax.lax.Precision.HIGHEST)
        b = jnp.dot(b, w_i, precision=jax.lax.Precision.HIGHEST) + b_i
    return w, b  # (30, 1), (1, 1)


def discriminator_input_pallas(rms_height, rela_length, inci, params,
                               block_rows=4096):
    """Forward pass of A_DiscriminatorInput.

    params: list of (w_t, b) with w_t (in, out) already equal-LR scaled and
            transposed, b (1, out) — same layout as the PyTorch module.
    block_rows: upper bound on the batch tile.  3 inputs * block_rows * 10
                f32, double-buffered, is ~1 MiB at 4096 — comfortably inside
                the scoped VMEM limit on v5e/v6e/v7x.
    """
    B = rms_height.shape[0]
    d1 = rms_height.shape[1]
    d2 = rela_length.shape[1]
    d3 = inci.shape[1]

    # ---- one-time parameter fusion ----
    w_fused, b_fused = _fuse_params(params)        # (30, 1), (1, 1)
    assert w_fused.shape[0] == d1 + d2 + d3
    w_row = w_fused.T.astype(jnp.float32)          # (1, 30)
    w1 = w_row[:, :d1]                             # (1, d1)
    w2 = w_row[:, d1:d1 + d2]                      # (1, d2)
    w3 = w_row[:, d1 + d2:]                        # (1, d3)
    b_fused = b_fused.astype(jnp.float32)

    # ---- batch tiling (lane-aligned) ----
    TB = max(LANE, min(_round_up(block_rows, LANE), _round_up(B, LANE)))
    Bp = _round_up(B, TB)
    num_tiles = Bp // TB

    def _pad(x):
        return x if Bp == B else jnp.pad(x, ((0, Bp - B), (0, 0)))

    x1, x2, x3 = _pad(rms_height), _pad(rela_length), _pad(inci)

    out = pl.pallas_call(
        _fused_linear_kernel,
        grid=(num_tiles,),
        in_specs=[
            # batch-tiled inputs (blocked specs default to VMEM)
            pl.BlockSpec((TB, d1), lambda i: (i, 0)),
            pl.BlockSpec((TB, d2), lambda i: (i, 0)),
            pl.BlockSpec((TB, d3), lambda i: (i, 0)),
            # fused-weight slabs: constant index_map -> resident across steps
            pl.BlockSpec((1, d1), lambda i: (0, 0)),
            pl.BlockSpec((1, d2), lambda i: (0, 0)),
            pl.BlockSpec((1, d3), lambda i: (0, 0)),
            # fused bias as an SMEM scalar
            pl.BlockSpec(memory_space=pltpu.MemorySpace.SMEM),
        ],
        # lane-dense output: (1,1,TB) unmasked stores, no lane-width-1 writes
        out_specs=pl.BlockSpec((1, 1, TB), lambda i: (i, 0, 0)),
        out_shape=jax.ShapeDtypeStruct((num_tiles, 1, TB), jnp.float32),
        compiler_params=pltpu.CompilerParams(
            dimension_semantics=("parallel",)),
    )(x1, x2, x3, w1, w2, w3, b_fused)

    # (num_tiles, 1, TB) -> (Bp, 1) (pure view, batch order preserved) -> (B, 1)
    return out.reshape(Bp, 1)[:B]


def init_params(key):
    """Deterministic EqualLinear parameter init (weight ~ N(0,1), bias = 0)."""
    params = []
    for i in range(len(FEATS) - 1):
        fan_in, fan_out = FEATS[i], FEATS[i + 1]
        key, sub = jax.random.split(key)
        w = jax.random.normal(sub, (fan_out, fan_in), dtype=jnp.float32)  # torch layout
        scale = 1.0 / jnp.sqrt(jnp.float32(fan_in))                        # equal-LR scale
        w_t = (w * scale).T                                                # (in, out)
        b = jnp.zeros((1, fan_out), dtype=jnp.float32)
        params.append((w_t, b))
    return params


def reference_forward(rms_height, rela_length, inci, params):
    """Pure-JAX layered reference mirroring the PyTorch module (f32 precision)."""
    h = jnp.concatenate([rms_height, rela_length, inci], axis=1)
    for w_t, b in params:
        h = jnp.dot(h, w_t, precision=jax.lax.Precision.HIGHEST) + b
    return h


if __name__ == "__main__":
    key = jax.random.PRNGKey(0)
    k_p, k_a, k_b, k_c = jax.random.split(key, 4)

    params = init_params(k_p)

    # Small batch; the three inputs concatenate to 30 features (10 + 10 + 10).
    B = 8
    rms_height = jax.random.normal(k_a, (B, 10), dtype=jnp.float32)
    rela_length = jax.random.normal(k_b, (B, 10), dtype=jnp.float32)
    inci = jax.random.normal(k_c, (B, 10), dtype=jnp.float32)

    out = discriminator_input_pallas(rms_height, rela_length, inci, params)
    out = jax.block_until_ready(out)

    ref = reference_forward(rms_height, rela_length, inci, params)
    assert out.shape == (B, 1), out.shape
    assert jnp.allclose(out, ref, atol=1e-4, rtol=1e-4), (out, ref)

    print("KERNEL_OK")
</pallas_src>

<mosaic_0001>
module attributes {stable_mosaic.version = 11 : i64} {
  func.func @_fused_linear_kernel(%arg0: i32, %arg1: memref<128x10xf32, #tpu.memory_space<vmem>>, %arg2: memref<128x10xf32, #tpu.memory_space<vmem>>, %arg3: memref<128x10xf32, #tpu.memory_space<vmem>>, %arg4: memref<1x10xf32, #tpu.memory_space<vmem>>, %arg5: memref<1x10xf32, #tpu.memory_space<vmem>>, %arg6: memref<1x10xf32, #tpu.memory_space<vmem>>, %arg7: memref<1x1xf32, #tpu.memory_space<smem>>, %arg8: memref<1x1x128xf32, #tpu.memory_space<vmem>>) attributes {dimension_semantics = [#tpu.dimension_semantics<parallel>], iteration_bounds = array<i64: 1>, scalar_prefetch = 0 : i64, scratch_operands = 0 : i64, tpu.core_type = #tpu.core_type<tc>, window_params = [{transform_indices = @transform_0, window_bounds = array<i64: 128, 10>}, {transform_indices = @transform_1, window_bounds = array<i64: 128, 10>}, {transform_indices = @transform_2, window_bounds = array<i64: 128, 10>}, {pipeline_mode = #tpu.pipeline_mode<synchronous>, transform_indices = @transform_3, window_bounds = array<i64: 1, 10>}, {pipeline_mode = #tpu.pipeline_mode<synchronous>, transform_indices = @transform_4, window_bounds = array<i64: 1, 10>}, {pipeline_mode = #tpu.pipeline_mode<synchronous>, transform_indices = @transform_5, window_bounds = array<i64: 1, 10>}, {transform_indices = @transform_6, window_bounds = array<i64: 1, 1>}, {transform_indices = @transform_7, window_bounds = array<i64: 1, 1, 128>}]} {
    %c0 = arith.constant 0 : index
    %c0_0 = arith.constant 0 : index
    %0 = vector.load %arg1[%c0, %c0_0] : memref<128x10xf32, #tpu.memory_space<vmem>>, vector<128x10xf32>
    %c0_1 = arith.constant 0 : index
    %c0_2 = arith.constant 0 : index
    %1 = vector.load %arg4[%c0_1, %c0_2] : memref<1x10xf32, #tpu.memory_space<vmem>>, vector<1x10xf32>
    %2 = vector.broadcast %1 : vector<1x10xf32> to vector<128x10xf32>
    %3 = arith.mulf %0, %2 : vector<128x10xf32>
    %cst = arith.constant dense<0.000000e+00> : vector<128xf32>
    %4 = vector.multi_reduction <add>, %3, %cst [1] : vector<128x10xf32> to vector<128xf32>
    %c0_3 = arith.constant 0 : index
    %c0_4 = arith.constant 0 : index
    %5 = vector.load %arg2[%c0_3, %c0_4] : memref<128x10xf32, #tpu.memory_space<vmem>>, vector<128x10xf32>
    %c0_5 = arith.constant 0 : index
    %c0_6 = arith.constant 0 : index
    %6 = vector.load %arg5[%c0_5, %c0_6] : memref<1x10xf32, #tpu.memory_space<vmem>>, vector<1x10xf32>
    %7 = vector.broadcast %6 : vector<1x10xf32> to vector<128x10xf32>
    %8 = arith.mulf %5, %7 : vector<128x10xf32>
    %cst_7 = arith.constant dense<0.000000e+00> : vector<128xf32>
    %9 = vector.multi_reduction <add>, %8, %cst_7 [1] : vector<128x10xf32> to vector<128xf32>
    %10 = arith.addf %4, %9 : vector<128xf32>
    %c0_8 = arith.constant 0 : index
    %c0_9 = arith.constant 0 : index
    %11 = vector.load %arg3[%c0_8, %c0_9] : memref<128x10xf32, #tpu.memory_space<vmem>>, vector<128x10xf32>
    %c0_10 = arith.constant 0 : index
    %c0_11 = arith.constant 0 : index
    %12 = vector.load %arg6[%c0_10, %c0_11] : memref<1x10xf32, #tpu.memory_space<vmem>>, vector<1x10xf32>
    %13 = vector.broadcast %12 : vector<1x10xf32> to vector<128x10xf32>
    %14 = arith.mulf %11, %13 : vector<128x10xf32>
    %cst_12 = arith.constant dense<0.000000e+00> : vector<128xf32>
    %15 = vector.multi_reduction <add>, %14, %cst_12 [1] : vector<128x10xf32> to vector<128xf32>
    %16 = arith.addf %10, %15 : vector<128xf32>
    %c0_13 = arith.constant 0 : index
    %c0_14 = arith.constant 0 : index
    %17 = memref.load %arg7[%c0_13, %c0_14] : memref<1x1xf32, #tpu.memory_space<smem>>
    %18 = vector.broadcast %17 : f32 to vector<128xf32>
    %19 = arith.addf %16, %18 : vector<128xf32>
    %20 = vector.shape_cast %19 : vector<128xf32> to vector<1x1x128xf32>
    %c0_15 = arith.constant 0 : index
    %c0_16 = arith.constant 0 : index
    %c0_17 = arith.constant 0 : index
    %21 = vector.load %arg8[%c0_15, %c0_16, %c0_17] : memref<1x1x128xf32, #tpu.memory_space<vmem>>, vector<1x1x128xf32>
    tpu.vector_store %arg8[%c0_15, %c0_16, %c0_17], %20 {strides = array<i32>} : memref<1x1x128xf32, #tpu.memory_space<vmem>>, vector<1x1x128xf32>,
    return
  }
  func.func @transform_0(%arg0: i32) -> (i32, i32) {
    %c0_i32 = arith.constant 0 : i32
    %c0_i32_0 = arith.constant 0 : i32
    return %arg0, %c0_i32 : i32, i32
  }
  func.func @transform_1(%arg0: i32) -> (i32, i32) {
    %c0_i32 = arith.constant 0 : i32
    %c0_i32_0 = arith.constant 0 : i32
    return %arg0, %c0_i32 : i32, i32
  }
  func.func @transform_2(%arg0: i32) -> (i32, i32) {
    %c0_i32 = arith.constant 0 : i32
    %c0_i32_0 = arith.constant 0 : i32
    return %arg0, %c0_i32 : i32, i32
  }
  func.func @transform_3(%arg0: i32) -> (i32, i32) {
    %c0_i32 = arith.constant 0 : i32
    %c0_i32_0 = arith.constant 0 : i32
    %c0_i32_1 = arith.constant 0 : i32
    return %c0_i32, %c0_i32_0 : i32, i32
  }
  func.func @transform_4(%arg0: i32) -> (i32, i32) {
    %c0_i32 = arith.constant 0 : i32
    %c0_i32_0 = arith.constant 0 : i32
    %c0_i32_1 = arith.constant 0 : i32
    return %c0_i32, %c0_i32_0 : i32, i32
  }
  func.func @transform_5(%arg0: i32) -> (i32, i32) {
    %c0_i32 = arith.constant 0 : i32
    %c0_i32_0 = arith.constant 0 : i32
    %c0_i32_1 = arith.constant 0 : i32
    return %c0_i32, %c0_i32_0 : i32, i32
  }
  func.func @transform_6(%arg0: i32) -> (i32, i32) {
    %c0_i32 = arith.constant 0 : i32
    %c0_i32_0 = arith.constant 0 : i32
    %c0_i32_1 = arith.constant 0 : i32
    return %c0_i32, %c0_i32_0 : i32, i32
  }
  func.func @transform_7(%arg0: i32) -> (i32, i32, i32) {
    %c0_i32 = arith.constant 0 : i32
    %c0_i32_0 = arith.constant 0 : i32
    %c0_i32_1 = arith.constant 0 : i32
    return %arg0, %c0_i32, %c0_i32_0 : i32, i32, i32
  }
}

</mosaic_0001>

<llo_original>
// kernel: tpu_custom_call.1
$region0: #{tpu_custom_call.1}
  #allocation0 [shape = 'u32[]', space=smem, size = 0x4, offset = 0x4, fixed_abs, tag = 'smem constant byte address 0x4 - core index']
  #allocation1 [shape = 'u32[144,128]{1,0:T(1,128)}', space=vmem, size = 0x12000, scoped, tag = 'internal scratch']
  #allocation2 [shape = 'f32[1,1]{1,0:T(1,128)S(6)}', space=smem, size = 0x200, scoped, tag = 'scoped memory for tpu_custom_call.1']
  %s0 = inlined_call_operand.vmem [shape: f32[128,10], index: 0, kind: input, shape index: {}]
  %s1 = inlined_call_operand.vmem [shape: f32[128,10], index: 1, kind: input, shape index: {}]
  %s2 = inlined_call_operand.vmem [shape: f32[128,10], index: 2, kind: input, shape index: {}]
  %s3 = inlined_call_operand.vmem [shape: f32[1,10], index: 3, kind: input, shape index: {}]
  %s4 = inlined_call_operand.vmem [shape: f32[1,10], index: 4, kind: input, shape index: {}]
  %s5 = inlined_call_operand.vmem [shape: f32[1,10], index: 5, kind: input, shape index: {}]
  %s6 = inlined_call_operand.<no memory space> [shape: f32[1,1], index: 6, kind: input, shape index: {}]
  %s7 = inlined_call_operand.hbm [shape: f32[1,1,128], index: 7, kind: output, shape index: {}]
  %s8 = sld [smem:[#allocation0]]
  $region38: #{tpu_custom_call.1} parent=0
    _
  %s10 = ssub.s32 1, %s8
  %s11 = scalar_select 0, %s10, %s8
  %12 = sst [smem:[#allocation2]] %s6
  $region1: #{tpu_custom_call.1} parent=0
    #allocation3 [shape = 'u8[512]{0}', space=vmem, size = 0x400, scoped, tag = 'output window, operand 0, single buffered']
    #allocation4 [shape = 's32[1]{0}', space=sflag, size = 0x4, scoped, tag = 'scoped memory for tpu_custom_call.1']
    %13 = vsyncpa [#allocation4], 0
    // Predicated region
    $region2: #{tpu_custom_call.1} parent=1 // pred_check
      _
    $region3: #{tpu_custom_call.1} parent=1 // pred_check_branch
      %15 = sbr.rel (0) target = $region5
    $region4: #{tpu_custom_call.1} parent=1 // pred_region
      _
    $region5: #{tpu_custom_call.1} parent=1 // pred_fallthru
      _
    // Predicated region
    $region6: #{tpu_custom_call.1} parent=1 // pred_check
      _
    $region7: #{tpu_custom_call.1} parent=1 // pred_check_branch
      %17 = sbr.rel (0) target = $region9
    $region8: #{tpu_custom_call.1} parent=1 // pred_region
      _
    $region9: #{tpu_custom_call.1} parent=1 // pred_fallthru
      _
    // Predicated region
    $region10: #{tpu_custom_call.1} parent=1 // pred_check
      _
    $region11: #{tpu_custom_call.1} parent=1 // pred_check_branch
      %19 = sbr.rel (0) target = $region13
    $region12: #{tpu_custom_call.1} parent=1 // pred_region
      _
    $region13: #{tpu_custom_call.1} parent=1 // pred_fallthru
      _
    // Predicated region
    $region14: #{tpu_custom_call.1} parent=1 // pred_check
      _
    $region15: #{tpu_custom_call.1} parent=1 // pred_check_branch
      %21 = sbr.rel (0) target = $region17
    $region16: #{tpu_custom_call.1} parent=1 // pred_region
      _
    $region17: #{tpu_custom_call.1} parent=1 // pred_fallthru
      _
    // Predicated region
    $region18: #{tpu_custom_call.1} parent=1 // pred_check
      _
    $region19: #{tpu_custom_call.1} parent=1 // pred_check_branch
      %23 = sbr.rel (0) target = $region21
    $region20: #{tpu_custom_call.1} parent=1 // pred_region
      _
    $region21: #{tpu_custom_call.1} parent=1 // pred_fallthru
      _
    // Predicated region
    $region22: #{tpu_custom_call.1} parent=1 // pred_check
      _
    $region23: #{tpu_custom_call.1} parent=1 // pred_check_branch
      %25 = sbr.rel (0) target = $region25
    $region24: #{tpu_custom_call.1} parent=1 // pred_region
      _
    $region25: #{tpu_custom_call.1} parent=1 // pred_fallthru
      _
    // Predicated region
    $region26: #{tpu_custom_call.1} parent=1 // pred_check
      _
    $region27: #{tpu_custom_call.1} parent=1 // pred_check_branch
      %27 = sbr.rel (0) target = $region29
    $region28: #{tpu_custom_call.1} parent=1 // pred_region
      _
    $region29: #{tpu_custom_call.1} parent=1 // pred_fallthru
      _
    %v28 = vld [vmem:[%s0] sm:$0xff]
    %v29 = vld [vmem:[%s0 + $0x8] sm:$0xff]
    %v30 = vld [vmem:[%s0 + $0x10] sm:$0xff]
    %v31 = vld [vmem:[%s0 + $0x18] sm:$0xff]
    %v32 = vld [vmem:[%s0 + $0x20] sm:$0xff]
    %v33 = vld [vmem:[%s0 + $0x28] sm:$0xff]
    %v34 = vld [vmem:[%s0 + $0x30] sm:$0xff]
    %v35 = vld [vmem:[%s0 + $0x38] sm:$0xff]
    %v36 = vld [vmem:[%s0 + $0x40] sm:$0xff]
    %v37 = vld [vmem:[%s0 + $0x48] sm:$0xff]
    %v38 = vld [vmem:[%s0 + $0x50] sm:$0xff]
    %v39 = vld [vmem:[%s0 + $0x58] sm:$0xff]
    %v40 = vld [vmem:[%s0 + $0x60] sm:$0xff]
    %v41 = vld [vmem:[%s0 + $0x68] sm:$0xff]
    %v42 = vld [vmem:[%s0 + $0x70] sm:$0xff]
    %v43 = vld [vmem:[%s0 + $0x78] sm:$0xff]
    %v44 = vld [vmem:[%s3] sm:$0x1]
    %v46 = vlaneseq
    %v47 = vshrl.u32 %v46, 7
    %v48 = vsub.s32 0, %v47
    %v49 = vrot.slane %v44, %v48
    %v51 = vmul.f32 %v28, %v49
    %v52 = vmul.f32 %v29, %v49
    %v53 = vmul.f32 %v30, %v49
    %v54 = vmul.f32 %v31, %v49
    %v55 = vmul.f32 %v32, %v49
    %v56 = vmul.f32 %v33, %v49
    %v57 = vmul.f32 %v34, %v49
    %v58 = vmul.f32 %v35, %v49
    %v59 = vmul.f32 %v36, %v49
    %v60 = vmul.f32 %v37, %v49
    %v61 = vmul.f32 %v38, %v49
    %v62 = vmul.f32 %v39, %v49
    %v63 = vmul.f32 %v40, %v49
    %v64 = vmul.f32 %v41, %v49
    %v65 = vmul.f32 %v42, %v49
    %v66 = vmul.f32 %v43, %v49
    %vm67 = vcmask 80896
    %v68 = vsel %vm67, %v51, 0.0
    %69 = vadd.xlane.f32.xlu0 %v68
    %v70 = vpop.xlane.xlu0 %69
    %v71 = vsel %vm67, %v52, 0.0
    %72 = vadd.xlane.f32.xlu0 %v71
    %v73 = vpop.xlane.xlu0 %72
    %v74 = vsel %vm67, %v53, 0.0
    %75 = vadd.xlane.f32.xlu0 %v74
    %v76 = vpop.xlane.xlu0 %75
    %v77 = vsel %vm67, %v54, 0.0
    %78 = vadd.xlane.f32.xlu0 %v77
    %v79 = vpop.xlane.xlu0 %78
    %v80 = vsel %vm67, %v55, 0.0
    %81 = vadd.xlane.f32.xlu0 %v80
    %v82 = vpop.xlane.xlu0 %81
    %v83 = vsel %vm67, %v56, 0.0
    %84 = vadd.xlane.f32.xlu0 %v83
    %v85 = vpop.xlane.xlu0 %84
    %v86 = vsel %vm67, %v57, 0.0
    %87 = vadd.xlane.f32.xlu0 %v86
    %v88 = vpop.xlane.xlu0 %87
    %v89 = vsel %vm67, %v58, 0.0
    %90 = vadd.xlane.f32.xlu0 %v89
    %v91 = vpop.xlane.xlu0 %90
    %v92 = vsel %vm67, %v59, 0.0
    %93 = vadd.xlane.f32.xlu0 %v92
    %v94 = vpop.xlane.xlu0 %93
    %v95 = vsel %vm67, %v60, 0.0
    %96 = vadd.xlane.f32.xlu0 %v95
    %v97 = vpop.xlane.xlu0 %96
    %v98 = vsel %vm67, %v61, 0.0
    %99 = vadd.xlane.f32.xlu0 %v98
    %v100 = vpop.xlane.xlu0 %99
    %v101 = vsel %vm67, %v62, 0.0
    %102 = vadd.xlane.f32.xlu0 %v101
    %v103 = vpop.xlane.xlu0 %102
    %v104 = vsel %vm67, %v63, 0.0
    %105 = vadd.xlane.f32.xlu0 %v104
    %v106 = vpop.xlane.xlu0 %105
    %v107 = vsel %vm67, %v64, 0.0
    %108 = vadd.xlane.f32.xlu0 %v107
    %v109 = vpop.xlane.xlu0 %108
    %v110 = vsel %vm67, %v65, 0.0
    %111 = vadd.xlane.f32.xlu0 %v110
    %v112 = vpop.xlane.xlu0 %111
    %v113 = vsel %vm67, %v66, 0.0
    %114 = vadd.xlane.f32.xlu0 %v113
    %v115 = vpop.xlane.xlu0 %114
    %v116 = vld [vmem:[%s1] sm:$0xff]
    %v117 = vld [vmem:[%s1 + $0x8] sm:$0xff]
    %v118 = vld [vmem:[%s1 + $0x10] sm:$0xff]
    %v119 = vld [vmem:[%s1 + $0x18] sm:$0xff]
    %v120 = vld [vmem:[%s1 + $0x20] sm:$0xff]
    %v121 = vld [vmem:[%s1 + $0x28] sm:$0xff]
    %v122 = vld [vmem:[%s1 + $0x30] sm:$0xff]
    %v123 = vld [vmem:[%s1 + $0x38] sm:$0xff]
    %v124 = vld [vmem:[%s1 + $0x40] sm:$0xff]
    %v125 = vld [vmem:[%s1 + $0x48] sm:$0xff]
    %v126 = vld [vmem:[%s1 + $0x50] sm:$0xff]
    %v127 = vld [vmem:[%s1 + $0x58] sm:$0xff]
    %v128 = vld [vmem:[%s1 + $0x60] sm:$0xff]
    %v129 = vld [vmem:[%s1 + $0x68] sm:$0xff]
    %v130 = vld [vmem:[%s1 + $0x70] sm:$0xff]
    %v131 = vld [vmem:[%s1 + $0x78] sm:$0xff]
    %v132 = vld [vmem:[%s4] sm:$0x1]
    %v134 = vlaneseq
    %v135 = vshrl.u32 %v134, 7
    %v136 = vsub.s32 0, %v135
    %v137 = vrot.slane %v132, %v136
    %v139 = vmul.f32 %v116, %v137
    %v140 = vmul.f32 %v117, %v137
    %v141 = vmul.f32 %v118, %v137
    %v142 = vmul.f32 %v119, %v137
    %v143 = vmul.f32 %v120, %v137
    %v144 = vmul.f32 %v121, %v137
    %v145 = vmul.f32 %v122, %v137
    %v146 = vmul.f32 %v123, %v137
    %v147 = vmul.f32 %v124, %v137
    %v148 = vmul.f32 %v125, %v137
    %v149 = vmul.f32 %v126, %v137
    %v150 = vmul.f32 %v127, %v137
    %v151 = vmul.f32 %v128, %v137
    %v152 = vmul.f32 %v129, %v137
    %v153 = vmul.f32 %v130, %v137
    %v154 = vmul.f32 %v131, %v137
    %v155 = vsel %vm67, %v139, 0.0
    %156 = vadd.xlane.f32.xlu0 %v155
    %v157 = vpop.xlane.xlu0 %156
    %v158 = vsel %vm67, %v140, 0.0
    %159 = vadd.xlane.f32.xlu0 %v158
    %v160 = vpop.xlane.xlu0 %159
    %v161 = vsel %vm67, %v141, 0.0
    %162 = vadd.xlane.f32.xlu0 %v161
    %v163 = vpop.xlane.xlu0 %162
    %v164 = vsel %vm67, %v142, 0.0
    %165 = vadd.xlane.f32.xlu0 %v164
    %v166 = vpop.xlane.xlu0 %165
    %v167 = vsel %vm67, %v143, 0.0
    %168 = vadd.xlane.f32.xlu0 %v167
    %v169 = vpop.xlane.xlu0 %168
    %v170 = vsel %vm67, %v144, 0.0
    %171 = vadd.xlane.f32.xlu0 %v170
    %v172 = vpop.xlane.xlu0 %171
    %v173 = vsel %vm67, %v145, 0.0
    %174 = vadd.xlane.f32.xlu0 %v173
    %v175 = vpop.xlane.xlu0 %174
    %v176 = vsel %vm67, %v146, 0.0
    %177 = vadd.xlane.f32.xlu0 %v176
    %v178 = vpop.xlane.xlu0 %177
    %v179 = vsel %vm67, %v147, 0.0
    %180 = vadd.xlane.f32.xlu0 %v179
    %v181 = vpop.xlane.xlu0 %180
    %v182 = vsel %vm67, %v148, 0.0
    %183 = vadd.xlane.f32.xlu0 %v182
    %v184 = vpop.xlane.xlu0 %183
    %v185 = vsel %vm67, %v149, 0.0
    %186 = vadd.xlane.f32.xlu0 %v185
    %v187 = vpop.xlane.xlu0 %186
    %v188 = vsel %vm67, %v150, 0.0
    %189 = vadd.xlane.f32.xlu0 %v188
    %v190 = vpop.xlane.xlu0 %189
    %v191 = vsel %vm67, %v151, 0.0
    %192 = vadd.xlane.f32.xlu0 %v191
    %v193 = vpop.xlane.xlu0 %192
    %v194 = vsel %vm67, %v152, 0.0
    %195 = vadd.xlane.f32.xlu0 %v194
    %v196 = vpop.xlane.xlu0 %195
    %v197 = vsel %vm67, %v153, 0.0
    %198 = vadd.xlane.f32.xlu0 %v197
    %v199 = vpop.xlane.xlu0 %198
    %v200 = vsel %vm67, %v154, 0.0
    %201 = vadd.xlane.f32.xlu0 %v200
    %v202 = vpop.xlane.xlu0 %201
    %v203 = vadd.f32 %v70, %v157
    %v204 = vadd.f32 %v73, %v160
    %v205 = vadd.f32 %v76, %v163
    %v206 = vadd.f32 %v79, %v166
    %v207 = vadd.f32 %v82, %v169
    %v208 = vadd.f32 %v85, %v172
    %v209 = vadd.f32 %v88, %v175
    %v210 = vadd.f32 %v91, %v178
    %v211 = vadd.f32 %v94, %v181
    %v212 = vadd.f32 %v97, %v184
    %v213 = vadd.f32 %v100, %v187
    %v214 = vadd.f32 %v103, %v190
    %v215 = vadd.f32 %v106, %v193
    %v216 = vadd.f32 %v109, %v196
    %v217 = vadd.f32 %v112, %v199
    %v218 = vadd.f32 %v115, %v202
    %v219 = vld [vmem:[%s2] sm:$0xff]
    %v220 = vld [vmem:[%s2 + $0x8] sm:$0xff]
    %v221 = vld [vmem:[%s2 + $0x10] sm:$0xff]
    %v222 = vld [vmem:[%s2 + $0x18] sm:$0xff]
    %v223 = vld [vmem:[%s2 + $0x20] sm:$0xff]
    %v224 = vld [vmem:[%s2 + $0x28] sm:$0xff]
    %v225 = vld [vmem:[%s2 + $0x30] sm:$0xff]
    %v226 = vld [vmem:[%s2 + $0x38] sm:$0xff]
    %v227 = vld [vmem:[%s2 + $0x40] sm:$0xff]
    %v228 = vld [vmem:[%s2 + $0x48] sm:$0xff]
    %v229 = vld [vmem:[%s2 + $0x50] sm:$0xff]
    %v230 = vld [vmem:[%s2 + $0x58] sm:$0xff]
    %v231 = vld [vmem:[%s2 + $0x60] sm:$0xff]
    %v232 = vld [vmem:[%s2 + $0x68] sm:$0xff]
    %v233 = vld [vmem:[%s2 + $0x70] sm:$0xff]
    %v234 = vld [vmem:[%s2 + $0x78] sm:$0xff]
    %v235 = vld [vmem:[%s5] sm:$0x1]
    %v237 = vlaneseq
    %v238 = vshrl.u32 %v237, 7
    %v239 = vsub.s32 0, %v238
    %v240 = vrot.slane %v235, %v239
    %v242 = vmul.f32 %v219, %v240
    %v243 = vmul.f32 %v220, %v240
    %v244 = vmul.f32 %v221, %v240
    %v245 = vmul.f32 %v222, %v240
    %v246 = vmul.f32 %v223, %v240
    %v247 = vmul.f32 %v224, %v240
    %v248 = vmul.f32 %v225, %v240
    %v249 = vmul.f32 %v226, %v240
    %v250 = vmul.f32 %v227, %v240
    %v251 = vmul.f32 %v228, %v240
    %v252 = vmul.f32 %v229, %v240
    %v253 = vmul.f32 %v230, %v240
    %v254 = vmul.f32 %v231, %v240
    %v255 = vmul.f32 %v232, %v240
    %v256 = vmul.f32 %v233, %v240
    %v257 = vmul.f32 %v234, %v240
    %v258 = vsel %vm67, %v242, 0.0
    %259 = vadd.xlane.f32.xlu0 %v258
    %v260 = vpop.xlane.xlu0 %259
    %v261 = vsel %vm67, %v243, 0.0
    %262 = vadd.xlane.f32.xlu0 %v261
    %v263 = vpop.xlane.xlu0 %262
    %v264 = vsel %vm67, %v244, 0.0
    %265 = vadd.xlane.f32.xlu0 %v264
    %v266 = vpop.xlane.xlu0 %265
    %v267 = vsel %vm67, %v245, 0.0
    %268 = vadd.xlane.f32.xlu0 %v267
    %v269 = vpop.xlane.xlu0 %268
    %v270 = vsel %vm67, %v246, 0.0
    %271 = vadd.xlane.f32.xlu0 %v270
    %v272 = vpop.xlane.xlu0 %271
    %v273 = vsel %vm67, %v247, 0.0
    %274 = vadd.xlane.f32.xlu0 %v273
    %v275 = vpop.xlane.xlu0 %274
    %v276 = vsel %vm67, %v248, 0.0
    %277 = vadd.xlane.f32.xlu0 %v276
    %v278 = vpop.xlane.xlu0 %277
    %v279 = vsel %vm67, %v249, 0.0
    %280 = vadd.xlane.f32.xlu0 %v279
    %v281 = vpop.xlane.xlu0 %280
    %v282 = vsel %vm67, %v250, 0.0
    %283 = vadd.xlane.f32.xlu0 %v282
    %v284 = vpop.xlane.xlu0 %283
    %v285 = vsel %vm67, %v251, 0.0
    %286 = vadd.xlane.f32.xlu0 %v285
    %v287 = vpop.xlane.xlu0 %286
    %v288 = vsel %vm67, %v252, 0.0
    %289 = vadd.xlane.f32.xlu0 %v288
    %v290 = vpop.xlane.xlu0 %289
    %v291 = vsel %vm67, %v253, 0.0
    %292 = vadd.xlane.f32.xlu0 %v291
    %v293 = vpop.xlane.xlu0 %292
    %v294 = vsel %vm67, %v254, 0.0
    %295 = vadd.xlane.f32.xlu0 %v294
    %v296 = vpop.xlane.xlu0 %295
    %v297 = vsel %vm67, %v255, 0.0
    %298 = vadd.xlane.f32.xlu0 %v297
    %v299 = vpop.xlane.xlu0 %298
    %v300 = vsel %vm67, %v256, 0.0
    %301 = vadd.xlane.f32.xlu0 %v300
    %v302 = vpop.xlane.xlu0 %301
    %v303 = vsel %vm67, %v257, 0.0
    %304 = vadd.xlane.f32.xlu0 %v303
    %v305 = vpop.xlane.xlu0 %304
    %v306 = vadd.f32 %v203, %v260
    %v307 = vadd.f32 %v204, %v263
    %v308 = vadd.f32 %v205, %v266
    %v309 = vadd.f32 %v206, %v269
    %v310 = vadd.f32 %v207, %v272
    %v311 = vadd.f32 %v208, %v275
    %v312 = vadd.f32 %v209, %v278
    %v313 = vadd.f32 %v210, %v281
    %v314 = vadd.f32 %v211, %v284
    %v315 = vadd.f32 %v212, %v287
    %v316 = vadd.f32 %v213, %v290
    %v317 = vadd.f32 %v214, %v293
    %v318 = vadd.f32 %v215, %v296
    %v319 = vadd.f32 %v216, %v299
    %v320 = vadd.f32 %v217, %v302
    %v321 = vadd.f32 %v218, %v305
    %s322 = sld [smem:[#allocation2]]
    %v323 = vstv %s322
    %v324 = vadd.f32 %v306, %v323
    %v325 = vadd.f32 %v307, %v323
    %v326 = vadd.f32 %v308, %v323
    %v327 = vadd.f32 %v309, %v323
    %v328 = vadd.f32 %v310, %v323
    %v329 = vadd.f32 %v311, %v323
    %v330 = vadd.f32 %v312, %v323
    %v331 = vadd.f32 %v313, %v323
    %v332 = vadd.f32 %v314, %v323
    %v333 = vadd.f32 %v315, %v323
    %v334 = vadd.f32 %v316, %v323
    %v335 = vadd.f32 %v317, %v323
    %v336 = vadd.f32 %v318, %v323
    %v337 = vadd.f32 %v319, %v323
    %v338 = vadd.f32 %v320, %v323
    %v339 = vadd.f32 %v321, %v323
    %v356 = vlaneseq
    %v357 = vand.u32 %v356, 127
    %v358 = vlaneseq
    %v359 = vshrl.u32 %v358, 7
    %v360 = vsub.s32 %v357, %v359
    %v361 = vrot.slane %v324, %v360
    %v362 = vadd.s32 %v357, 4294967288
    %v363 = vlaneseq
    %v364 = vshrl.u32 %v363, 7
    %v365 = vsub.s32 %v362, %v364
    %v366 = vrot.slane %v325, %v365
    %vm367 = vcmask 130112
    %v368 = vsel %vm367, %v366, %v361
    %v369 = vadd.s32 %v357, 4294967280
    %v370 = vlaneseq
    %v371 = vshrl.u32 %v370, 7
    %v372 = vsub.s32 %v369, %v371
    %v373 = vrot.slane %v326, %v372
    %vm374 = vcmask 195712
    %v375 = vsel %vm374, %v373, %v368
    %v376 = vadd.s32 %v357, 4294967272
    %v377 = vlaneseq
    %v378 = vshrl.u32 %v377, 7
    %v379 = vsub.s32 %v376, %v378
    %v380 = vrot.slane %v327, %v379
    %vm381 = vcmask 261312
    %v382 = vsel %vm381, %v380, %v375
    %v383 = vadd.s32 %v357, 4294967264
    %v384 = vlaneseq
    %v385 = vshrl.u32 %v384, 7
    %v386 = vsub.s32 %v383, %v385
    %v387 = vrot.slane %v328, %v386
    %vm388 = vcmask 326912
    %v389 = vsel %vm388, %v387, %v382
    %v390 = vadd.s32 %v357, 4294967256
    %v391 = vlaneseq
    %v392 = vshrl.u32 %v391, 7
    %v393 = vsub.s32 %v390, %v392
    %v394 = vrot.slane %v329, %v393
    %vm395 = vcmask 392512
    %v396 = vsel %vm395, %v394, %v389
    %v397 = vadd.s32 %v357, 4294967248
    %v398 = vlaneseq
    %v399 = vshrl.u32 %v398, 7
    %v400 = vsub.s32 %v397, %v399
    %v401 = vrot.slane %v330, %v400
    %vm402 = vcmask 458112
    %v403 = vsel %vm402, %v401, %v396
    %v404 = vadd.s32 %v357, 4294967240
    %v405 = vlaneseq
    %v406 = vshrl.u32 %v405, 7
    %v407 = vsub.s32 %v404, %v406
    %v408 = vrot.slane %v331, %v407
    %vm409 = vcmask 523712
    %v410 = vsel %vm409, %v408, %v403
    %v411 = vadd.s32 %v357, 4294967232
    %v412 = vlaneseq
    %v413 = vshrl.u32 %v412, 7
    %v414 = vsub.s32 %v411, %v413
    %v415 = vrot.slane %v332, %v414
    %vm416 = vcmask 589312
    %v417 = vsel %vm416, %v415, %v410
    %v418 = vadd.s32 %v357, 4294967224
    %v419 = vlaneseq
    %v420 = vshrl.u32 %v419, 7
    %v421 = vsub.s32 %v418, %v420
    %v422 = vrot.slane %v333, %v421
    %vm423 = vcmask 654912
    %v424 = vsel %vm423, %v422, %v417
    %v425 = vadd.s32 %v357, 4294967216
    %v426 = vlaneseq
    %v427 = vshrl.u32 %v426, 7
    %v428 = vsub.s32 %v425, %v427
    %v429 = vrot.slane %v334, %v428
    %vm430 = vcmask 720512
    %v431 = vsel %vm430, %v429, %v424
    %v432 = vadd.s32 %v357, 4294967208
    %v433 = vlaneseq
    %v434 = vshrl.u32 %v433, 7
    %v435 = vsub.s32 %v432, %v434
    %v436 = vrot.slane %v335, %v435
    %vm437 = vcmask 786112
    %v438 = vsel %vm437, %v436, %v431
    %v439 = vadd.s32 %v357, 4294967200
    %v440 = vlaneseq
    %v441 = vshrl.u32 %v440, 7
    %v442 = vsub.s32 %v439, %v441
    %v443 = vrot.slane %v336, %v442
    %vm444 = vcmask 851712
    %v445 = vsel %vm444, %v443, %v438
    %v446 = vadd.s32 %v357, 4294967192
    %v447 = vlaneseq
    %v448 = vshrl.u32 %v447, 7
    %v449 = vsub.s32 %v446, %v448
    %v450 = vrot.slane %v337, %v449
    %vm451 = vcmask 917312
    %v452 = vsel %vm451, %v450, %v445
    %v453 = vadd.s32 %v357, 4294967184
    %v454 = vlaneseq
    %v455 = vshrl.u32 %v454, 7
    %v456 = vsub.s32 %v453, %v455
    %v457 = vrot.slane %v338, %v456
    %vm458 = vcmask 982912
    %v459 = vsel %vm458, %v457, %v452
    %v460 = vadd.s32 %v357, 4294967176
    %v461 = vlaneseq
    %v462 = vshrl.u32 %v461, 7
    %v463 = vsub.s32 %v460, %v462
    %v464 = vrot.slane %v339, %v463
    %vm465 = vcmask 1048512
    %v466 = vsel %vm465, %v464, %v459
    %468 = vst [vmem:[#allocation3] sm:$0x1] %v466
    // Predicated region
    $region30: #{tpu_custom_call.1} parent=1 // pred_check
      _
    $region31: #{tpu_custom_call.1} parent=1 // pred_check_branch
      %470 = sbr.rel (0) target = $region33
    $region32: #{tpu_custom_call.1} parent=1 // pred_region
      %s472 = ssub.s32 16, 16
      %473 = vsyncadd [#allocation4], %s472
      %s475 = sshll.u32 [#allocation3], 4
      %s476 = int_to_ptr.vmem [resolvable:$true] %s475
      %478 = dma.vmem_to_hbm [thread:$0]  %s476, 16, %s7, [#allocation4]
    $region33: #{tpu_custom_call.1} parent=1 // pred_fallthru
      _
    // Predicated region
    $region34: #{tpu_custom_call.1} parent=1 // pred_check
      _
    $region35: #{tpu_custom_call.1} parent=1 // pred_check_branch
      %480 = sbr.rel (0) target = $region37
    $region36: #{tpu_custom_call.1} parent=1 // pred_region
      %481 = dma.done [#allocation4], 16
    $region37: #{tpu_custom_call.1} parent=1 // pred_fallthru
      _
    %482 = vsyncpa [#allocation4], 1

</llo_original>
